<compile_context>
chip_gen: v7x
topology: tpu7x:2x2x1
jax: 0.10.0
libtpu: 0.0.40
codegen_flags: <defaults>
</compile_context>

<pallas_src>
import math

import jax
import jax.numpy as jnp
from jax import lax
from jax.experimental import pallas as pl
from jax.experimental.pallas import tpu as pltpu


# ----------------------------------------------------------------------------
# Tiling helpers
# ----------------------------------------------------------------------------
def _row_tile(m, target=256):
    """Large row tile (amortize per-step pipeline overhead), but leave >=2 grid
    steps when possible so both v7x TensorCores get work. Result is a multiple
    of 8 (f32 sublane) or the full extent."""
    if m <= 8:
        return m
    target = max(8, min(target, m // 2))
    if m % target == 0 and target % 8 == 0:
        return target
    t = (target // 8) * 8
    while t >= 8:
        if m % t == 0:
            return t
        t -= 8
    return m


def _col_tile(n, target=256):
    """ff-axis (reduction) tile: multiple of 128 (lane-dense) or full extent."""
    if n <= target:
        return n
    t = (target // 128) * 128
    while t >= 128:
        if n % t == 0:
            return t
        t -= 128
    return n


# ----------------------------------------------------------------------------
# Kernel 1: linear layer  y = x @ W + b
# ----------------------------------------------------------------------------
def _linear_kernel(x_ref, w_ref, b_ref, o_ref):
    y = jnp.dot(x_ref[...], w_ref[...], preferred_element_type=jnp.float32) + b_ref[...]
    o_ref[...] = y.astype(o_ref.dtype)


def linear(x2d, w, b, *, tm_target=256):
    m, din = x2d.shape
    dout = w.shape[1]
    tm = _row_tile(m, tm_target)
    return pl.pallas_call(
        _linear_kernel,
        out_shape=jax.ShapeDtypeStruct((m, dout), x2d.dtype),
        grid_spec=pltpu.PrefetchScalarGridSpec(
            num_scalar_prefetch=0,
            grid=(m // tm,),
            in_specs=[
                pl.BlockSpec((tm, din), lambda i: (i, 0)),
                pl.BlockSpec((din, dout), lambda i: (0, 0)),
                pl.BlockSpec((1, dout), lambda i: (0, 0)),
            ],
            out_specs=pl.BlockSpec((tm, dout), lambda i: (i, 0)),
        ),
        compiler_params=pltpu.CompilerParams(dimension_semantics=("parallel",)),
    )(x2d, w, b.reshape(1, dout))


# ----------------------------------------------------------------------------
# Kernel 2: scaled dot-product attention core (per batch, per head)
# ----------------------------------------------------------------------------
def _attn_kernel(q_ref, k_ref, v_ref, m_ref, o_ref, w_ref):
    q = q_ref[...][0, 0].astype(jnp.float32)        # (Lq, hd)
    k = k_ref[...][0, 0].astype(jnp.float32)        # (Lk, hd)
    v = v_ref[...][0, 0]                            # (Lk, hd)
    mask = m_ref[...][0, 0].astype(jnp.float32)     # (mq, Lk), mq in {1, Lq}

    scale = 1.0 / math.sqrt(q.shape[-1])
    s = jnp.dot(q, k.T, preferred_element_type=jnp.float32) * scale
    s = s + mask * (-1e9)
    s = s - jnp.max(s, axis=-1, keepdims=True)
    p = jnp.exp(s)
    p = p / jnp.sum(p, axis=-1, keepdims=True)

    o = jnp.dot(p.astype(v.dtype), v, preferred_element_type=jnp.float32)
    w_ref[...] = p.astype(w_ref.dtype)[None, None]
    o_ref[...] = o.astype(o_ref.dtype)[None, None]


def attention_core(q, k, v, mask):
    """q/k/v: [B, H, L, hd]; mask: [B, 1, mq, Lk] with mq in {1, Lq}."""
    b, h, lq, hd = q.shape
    lk = k.shape[2]
    mq = mask.shape[2]
    out, attn_w = pl.pallas_call(
        _attn_kernel,
        out_shape=(
            jax.ShapeDtypeStruct((b, h, lq, hd), q.dtype),
            jax.ShapeDtypeStruct((b, h, lq, lk), jnp.float32),
        ),
        grid_spec=pltpu.PrefetchScalarGridSpec(
            num_scalar_prefetch=0,
            grid=(b, h),
            in_specs=[
                pl.BlockSpec((1, 1, lq, hd), lambda bi, hi: (bi, hi, 0, 0)),
                pl.BlockSpec((1, 1, lk, hd), lambda bi, hi: (bi, hi, 0, 0)),
                pl.BlockSpec((1, 1, lk, hd), lambda bi, hi: (bi, hi, 0, 0)),
                pl.BlockSpec((1, 1, mq, lk), lambda bi, hi: (bi, 0, 0, 0)),
            ],
            out_specs=(
                pl.BlockSpec((1, 1, lq, hd), lambda bi, hi: (bi, hi, 0, 0)),
                pl.BlockSpec((1, 1, lq, lk), lambda bi, hi: (bi, hi, 0, 0)),
            ),
        ),
        compiler_params=pltpu.CompilerParams(
            dimension_semantics=("parallel", "parallel")),
    )(q, k, v, mask)
    return out, attn_w


# ----------------------------------------------------------------------------
# Kernel 3: residual add + LayerNorm (eps = 1e-6)
# ----------------------------------------------------------------------------
def _add_ln_kernel(x_ref, r_ref, g_ref, b_ref, o_ref):
    x = x_ref[...].astype(jnp.float32) + r_ref[...].astype(jnp.float32)
    mu = jnp.mean(x, axis=-1, keepdims=True)
    xc = x - mu
    var = jnp.mean(xc * xc, axis=-1, keepdims=True)
    y = xc * lax.rsqrt(var + 1e-6)
    o_ref[...] = (y * g_ref[...] + b_ref[...]).astype(o_ref.dtype)


def add_layer_norm(x, res, gamma, beta, *, tm_target=256):
    batch, seq, dim = x.shape
    m = batch * seq
    tm = _row_tile(m, tm_target)
    out = pl.pallas_call(
        _add_ln_kernel,
        out_shape=jax.ShapeDtypeStruct((m, dim), x.dtype),
        grid_spec=pltpu.PrefetchScalarGridSpec(
            num_scalar_prefetch=0,
            grid=(m // tm,),
            in_specs=[
                pl.BlockSpec((tm, dim), lambda i: (i, 0)),
                pl.BlockSpec((tm, dim), lambda i: (i, 0)),
                pl.BlockSpec((1, dim), lambda i: (0, 0)),
                pl.BlockSpec((1, dim), lambda i: (0, 0)),
            ],
            out_specs=pl.BlockSpec((tm, dim), lambda i: (i, 0)),
        ),
        compiler_params=pltpu.CompilerParams(dimension_semantics=("parallel",)),
    )(x.reshape(m, dim), res.reshape(m, dim),
      gamma.reshape(1, dim), beta.reshape(1, dim))
    return out.reshape(batch, seq, dim)


# ----------------------------------------------------------------------------
# Kernel 4: FeedForward (Linear -> ReLU -> Linear), ff-axis tiled reduction
# ----------------------------------------------------------------------------
def _ffn_kernel(x_ref, w1_ref, b1_ref, w2_ref, b2_ref, o_ref, acc_ref):
    k = pl.program_id(1)

    @pl.when(k == 0)
    def _init():
        acc_ref[...] = jnp.zeros_like(acc_ref)

    h = jnp.dot(x_ref[...], w1_ref[...], preferred_element_type=jnp.float32) + b1_ref[...]
    h = jnp.maximum(h, 0.0)
    acc_ref[...] += jnp.dot(h.astype(w2_ref.dtype), w2_ref[...],
                            preferred_element_type=jnp.float32)

    @pl.when(k == pl.num_programs(1) - 1)
    def _finalize():
        o_ref[...] = (acc_ref[...] + b2_ref[...]).astype(o_ref.dtype)


def feed_forward(x, w1, b1, w2, b2, *, tm_target=256, tf_target=256):
    """x: [B, S, dim]; w1: [dim, ff]; b1: [ff]; w2: [ff, dim]; b2: [dim]."""
    batch, seq, dim = x.shape
    ff = w1.shape[1]
    m = batch * seq
    tm = _row_tile(m, tm_target)
    tf = _col_tile(ff, tf_target)
    x2d = x.reshape(m, dim)

    flops = 4 * m * dim * ff                       # two matmuls
    bytes_accessed = 4 * (2 * m * dim + 2 * dim * ff + ff + dim)

    out2d = pl.pallas_call(
        _ffn_kernel,
        out_shape=jax.ShapeDtypeStruct((m, dim), x.dtype),
        grid_spec=pltpu.PrefetchScalarGridSpec(
            num_scalar_prefetch=0,
            grid=(m // tm, ff // tf),
            in_specs=[
                pl.BlockSpec((tm, dim), lambda i, k: (i, 0)),   # x tile (resident over k)
                pl.BlockSpec((dim, tf), lambda i, k: (0, k)),   # w1 ff-tile
                pl.BlockSpec((1, tf), lambda i, k: (0, k)),     # b1 ff-tile
                pl.BlockSpec((tf, dim), lambda i, k: (k, 0)),   # w2 ff-tile
                pl.BlockSpec((1, dim), lambda i, k: (0, 0)),    # b2
            ],
            out_specs=pl.BlockSpec((tm, dim), lambda i, k: (i, 0)),
            scratch_shapes=[pltpu.VMEM((tm, dim), jnp.float32)],
        ),
        compiler_params=pltpu.CompilerParams(
            dimension_semantics=("parallel", "arbitrary")),
        cost_estimate=pl.CostEstimate(flops=flops, transcendentals=0,
                                      bytes_accessed=bytes_accessed),
    )(x2d, w1, b1.reshape(1, ff), w2, b2.reshape(1, dim))
    return out2d.reshape(batch, seq, dim)


# ----------------------------------------------------------------------------
# Module composition (MultiHeadAttention / DecoderLayer / TransformerDecoder)
# ----------------------------------------------------------------------------
def multi_head_attention(p, q_in, k_in, v_in, mask, num_heads):
    b, lq, d = q_in.shape
    lk = k_in.shape[1]
    hd = d // num_heads

    def proj(x, w, bias):
        l = x.shape[1]
        return linear(x.reshape(b * l, d), w, bias).reshape(b, l, num_heads, hd)

    Q = proj(q_in, p["wq"], p["bq"]).transpose(0, 2, 1, 3)
    K = proj(k_in, p["wk"], p["bk"]).transpose(0, 2, 1, 3)
    V = proj(v_in, p["wv"], p["bv"]).transpose(0, 2, 1, 3)

    attn_out, attn_w = attention_core(Q, K, V, mask)
    concat = attn_out.transpose(0, 2, 1, 3).reshape(b * lq, d)
    out = linear(concat, p["wo"], p["bo"]).reshape(b, lq, d)
    return out, attn_w


def decoder_layer(p, x, combined_mask, enc_output, inp_padding_mask, num_heads):
    att1, w1 = multi_head_attention(p["mha1"], x, x, x, combined_mask, num_heads)
    y1 = add_layer_norm(x, att1, p["ln1_g"], p["ln1_b"])          # dropout = identity
    att2, w2 = multi_head_attention(p["mha2"], y1, enc_output, enc_output,
                                    inp_padding_mask, num_heads)
    y2 = add_layer_norm(y1, att2, p["ln2_g"], p["ln2_b"])
    ffn_out = feed_forward(y2, p["ffn_w1"], p["ffn_b1"], p["ffn_w2"], p["ffn_b2"])
    y3 = add_layer_norm(y2, ffn_out, p["ln3_g"], p["ln3_b"])
    return y3, w1, w2


def transformer_decoder(params, trg_input_ids, enc_output, inp_padding_mask,
                        trg_combined_mask, num_heads):
    # TODO(synk): embedding gather + positional-encoding add stay in plain XLA;
    # a Pallas gather (pl.Element + scalar prefetch) is possible but not worthwhile here.
    emb = jnp.take(params["embedding"], trg_input_ids, axis=0)
    seq = trg_input_ids.shape[1]
    x = emb + params["pe"][None, :seq, :]          # dropout = identity (inference)
    attention_weights = {}
    for i, lp in enumerate(params["layers"]):
        x, b1, b2 = decoder_layer(lp, x, trg_combined_mask, enc_output,
                                  inp_padding_mask, num_heads)
        attention_weights["decoder_layer{}_block1".format(i + 1)] = b1
        attention_weights["decoder_layer{}_block2".format(i + 1)] = b2
    return x, attention_weights


# ----------------------------------------------------------------------------
# Parameter init (mimics torch defaults) + positional-encoding table
# ----------------------------------------------------------------------------
def positional_encoding_table(max_len, dim):
    pos = jnp.arange(max_len, dtype=jnp.float32)[:, None]
    div = jnp.exp(jnp.arange(0, dim, 2, dtype=jnp.float32) * (-math.log(10000.0) / dim))
    pe = jnp.zeros((max_len, dim), jnp.float32)
    pe = pe.at[:, 0::2].set(jnp.sin(pos * div))
    pe = pe.at[:, 1::2].set(jnp.cos(pos * div))
    return pe


def _init_linear(key, fan_in, fan_out, dtype=jnp.float32):
    kw, kb = jax.random.split(key)
    bound = 1.0 / math.sqrt(fan_in)
    w = jax.random.uniform(kw, (fan_in, fan_out), dtype, -bound, bound)
    b = jax.random.uniform(kb, (fan_out,), dtype, -bound, bound)
    return w, b


def _init_mha(key, dim):
    k1, k2, k3, k4 = jax.random.split(key, 4)
    wq, bq = _init_linear(k1, dim, dim)
    wk, bk = _init_linear(k2, dim, dim)
    wv, bv = _init_linear(k3, dim, dim)
    wo, bo = _init_linear(k4, dim, dim)
    return dict(wq=wq, bq=bq, wk=wk, bk=bk, wv=wv, bv=bv, wo=wo, bo=bo)


def init_params(key, vocab, dim, ff, num_layers, max_len=64, dtype=jnp.float32):
    keys = jax.random.split(key, num_layers + 1)
    emb = jax.random.normal(keys[0], (vocab, dim), dtype)   # nn.Embedding ~ N(0,1)
    layers = []
    for i in range(num_layers):
        k_mha1, k_mha2, k_ff1, k_ff2 = jax.random.split(keys[i + 1], 4)
        w1, b1 = _init_linear(k_ff1, dim, ff)
        w2, b2 = _init_linear(k_ff2, ff, dim)
        layers.append(dict(
            mha1=_init_mha(k_mha1, dim), mha2=_init_mha(k_mha2, dim),
            ffn_w1=w1, ffn_b1=b1, ffn_w2=w2, ffn_b2=b2,
            ln1_g=jnp.ones((dim,), dtype), ln1_b=jnp.zeros((dim,), dtype),
            ln2_g=jnp.ones((dim,), dtype), ln2_b=jnp.zeros((dim,), dtype),
            ln3_g=jnp.ones((dim,), dtype), ln3_b=jnp.zeros((dim,), dtype),
        ))
    return dict(embedding=emb, pe=positional_encoding_table(max_len, dim), layers=layers)


# ----------------------------------------------------------------------------
# Pure-JAX reference (high-precision) for correctness checking
# ----------------------------------------------------------------------------
_HI = lax.Precision.HIGHEST


def _ref_ln(x, g, b, eps=1e-6):
    mu = jnp.mean(x, axis=-1, keepdims=True)
    var = jnp.mean((x - mu) ** 2, axis=-1, keepdims=True)
    return (x - mu) / jnp.sqrt(var + eps) * g + b


def _ref_mha(p, q_in, k_in, v_in, mask, num_heads):
    b, lq, d = q_in.shape
    lk = k_in.shape[1]
    hd = d // num_heads

    def proj(x, w, bias):
        return jnp.einsum("bld,df->blf", x, w, precision=_HI) + bias

    Q = proj(q_in, p["wq"], p["bq"]).reshape(b, lq, num_heads, hd).transpose(0, 2, 1, 3)
    K = proj(k_in, p["wk"], p["bk"]).reshape(b, lk, num_heads, hd).transpose(0, 2, 1, 3)
    V = proj(v_in, p["wv"], p["bv"]).reshape(b, lk, num_heads, hd).transpose(0, 2, 1, 3)
    s = jnp.einsum("bhqd,bhkd->bhqk", Q, K, precision=_HI) / math.sqrt(hd)
    s = s + mask * (-1e9)
    w = jax.nn.softmax(s, axis=-1)
    o = jnp.einsum("bhqk,bhkd->bhqd", w, V, precision=_HI)
    o = o.transpose(0, 2, 1, 3).reshape(b, lq, d)
    out = jnp.einsum("bld,df->blf", o, p["wo"], precision=_HI) + p["bo"]
    return out, w


def _ref_ffn(x, w1, b1, w2, b2):
    h = jnp.maximum(jnp.einsum("bld,df->blf", x, w1, precision=_HI) + b1, 0.0)
    return jnp.einsum("blf,fd->bld", h, w2, precision=_HI) + b2


def _ref_decoder_layer(p, x, comb, enc, pad, num_heads):
    a1, w1 = _ref_mha(p["mha1"], x, x, x, comb, num_heads)
    y1 = _ref_ln(x + a1, p["ln1_g"], p["ln1_b"])
    a2, w2 = _ref_mha(p["mha2"], y1, enc, enc, pad, num_heads)
    y2 = _ref_ln(y1 + a2, p["ln2_g"], p["ln2_b"])
    f = _ref_ffn(y2, p["ffn_w1"], p["ffn_b1"], p["ffn_w2"], p["ffn_b2"])
    return _ref_ln(y2 + f, p["ln3_g"], p["ln3_b"]), w1, w2


def _ref_transformer_decoder(params, ids, enc, pad, comb, num_heads):
    emb = jnp.take(params["embedding"], ids, axis=0)
    x = emb + params["pe"][None, :ids.shape[1], :]
    attn = {}
    for i, lp in enumerate(params["layers"]):
        x, b1, b2 = _ref_decoder_layer(lp, x, comb, enc, pad, num_heads)
        attn["decoder_layer{}_block1".format(i + 1)] = b1
        attn["decoder_layer{}_block2".format(i + 1)] = b2
    return x, attn


# ----------------------------------------------------------------------------
# Demo
# ----------------------------------------------------------------------------
if __name__ == "__main__":
    # Small, lane-dense config (dim / ff multiples of 128 per the perf review).
    vocab, dim, ff, num_heads, num_layers = 64, 128, 512, 4, 2
    batch, trg_seq, src_seq = 2, 8, 8

    key = jax.random.PRNGKey(0)
    k_par, k_ids, k_enc = jax.random.split(key, 3)
    params = init_params(k_par, vocab, dim, ff, num_layers, max_len=64)

    trg_ids = jax.random.randint(k_ids, (batch, trg_seq), 0, vocab)
    enc_output = jax.random.normal(k_enc, (batch, src_seq, dim), jnp.float32)

    # Decoder self-attention mask: look-ahead + target padding (pad id = 0).
    look_ahead = 1.0 - jnp.tril(jnp.ones((trg_seq, trg_seq), jnp.float32))
    trg_pad = (trg_ids == 0).astype(jnp.float32)[:, None, None, :]
    trg_combined_mask = jnp.maximum(look_ahead[None, None, :, :], trg_pad)   # [B,1,Lt,Lt]
    # Encoder-output padding mask: last two source positions padded.
    inp_padding_mask = jnp.zeros((batch, 1, 1, src_seq), jnp.float32)
    inp_padding_mask = inp_padding_mask.at[:, :, :, -2:].set(1.0)            # [B,1,1,Ls]

    out, attn_weights = transformer_decoder(
        params, trg_ids, enc_output, inp_padding_mask, trg_combined_mask, num_heads)
    out = jax.block_until_ready(out)

    ref_out, ref_attn = _ref_transformer_decoder(
        params, trg_ids, enc_output, inp_padding_mask, trg_combined_mask, num_heads)

    assert out.shape == (batch, trg_seq, dim)
    assert jnp.allclose(out, ref_out, atol=2e-3, rtol=2e-3), "output mismatch vs reference"
    for name in ref_attn:
        assert attn_weights[name].shape == ref_attn[name].shape
        assert jnp.allclose(attn_weights[name], ref_attn[name], atol=2e-3, rtol=2e-3), (
            "attention-weight mismatch: " + name)

    print("KERNEL_OK")
</pallas_src>

<mosaic_0001>
module attributes {stable_mosaic.version = 11 : i64} {
  func.func @_linear_kernel(%arg0: i32, %arg1: memref<8x128xf32, #tpu.memory_space<vmem>>, %arg2: memref<128x128xf32, #tpu.memory_space<vmem>>, %arg3: memref<1x128xf32, #tpu.memory_space<vmem>>, %arg4: memref<8x128xf32, #tpu.memory_space<vmem>>) attributes {dimension_semantics = [#tpu.dimension_semantics<parallel>], iteration_bounds = array<i64: 2>, scalar_prefetch = 0 : i64, scratch_operands = 0 : i64, tpu.core_type = #tpu.core_type<tc>, window_params = [{transform_indices = @transform_0, window_bounds = array<i64: 8, 128>}, {pipeline_mode = #tpu.pipeline_mode<synchronous>, transform_indices = @transform_1, window_bounds = array<i64: 128, 128>}, {pipeline_mode = #tpu.pipeline_mode<synchronous>, transform_indices = @transform_2, window_bounds = array<i64: 1, 128>}, {transform_indices = @transform_3, window_bounds = array<i64: 8, 128>}]} {
    %c0 = arith.constant 0 : index
    %c0_0 = arith.constant 0 : index
    %0 = vector.load %arg1[%c0, %c0_0] : memref<8x128xf32, #tpu.memory_space<vmem>>, vector<8x128xf32>
    %c0_1 = arith.constant 0 : index
    %c0_2 = arith.constant 0 : index
    %1 = vector.load %arg2[%c0_1, %c0_2] : memref<128x128xf32, #tpu.memory_space<vmem>>, vector<128x128xf32>
    %cst = arith.constant dense<0.000000e+00> : vector<8x128xf32>
    %2 = tpu.matmul %0, %1, %cst {dimension_numbers = #tpu.dot_dimension_numbers<[1], [0], [0], [1], [0, 0, 1, 1], [], []>} : vector<8x128xf32>, vector<128x128xf32>, vector<8x128xf32> -> vector<8x128xf32>
    %c0_3 = arith.constant 0 : index
    %c0_4 = arith.constant 0 : index
    %3 = vector.load %arg3[%c0_3, %c0_4] : memref<1x128xf32, #tpu.memory_space<vmem>>, vector<1x128xf32>
    %4 = vector.broadcast %3 : vector<1x128xf32> to vector<8x128xf32>
    %5 = arith.addf %2, %4 : vector<8x128xf32>
    %c0_5 = arith.constant 0 : index
    %c0_6 = arith.constant 0 : index
    %6 = vector.load %arg4[%c0_5, %c0_6] : memref<8x128xf32, #tpu.memory_space<vmem>>, vector<8x128xf32>
    tpu.vector_store %arg4[%c0_5, %c0_6], %5 {strides = array<i32>} : memref<8x128xf32, #tpu.memory_space<vmem>>, vector<8x128xf32>,
    return
  }
  func.func @transform_0(%arg0: i32) -> (i32, i32) {
    %c0_i32 = arith.constant 0 : i32
    %c0_i32_0 = arith.constant 0 : i32
    return %arg0, %c0_i32 : i32, i32
  }
  func.func @transform_1(%arg0: i32) -> (i32, i32) {
    %c0_i32 = arith.constant 0 : i32
    %c0_i32_0 = arith.constant 0 : i32
    %c0_i32_1 = arith.constant 0 : i32
    return %c0_i32, %c0_i32_0 : i32, i32
  }
  func.func @transform_2(%arg0: i32) -> (i32, i32) {
    %c0_i32 = arith.constant 0 : i32
    %c0_i32_0 = arith.constant 0 : i32
    %c0_i32_1 = arith.constant 0 : i32
    return %c0_i32, %c0_i32_0 : i32, i32
  }
  func.func @transform_3(%arg0: i32) -> (i32, i32) {
    %c0_i32 = arith.constant 0 : i32
    %c0_i32_0 = arith.constant 0 : i32
    return %arg0, %c0_i32 : i32, i32
  }
}

</mosaic_0001>

<llo_original>
// kernel: tpu_custom_call.1
$region0: #{tpu_custom_call.1}
  #allocation0 [shape = 'u32[]', space=smem, size = 0x4, offset = 0x4, fixed_abs, tag = 'smem constant byte address 0x4 - core index']
  #allocation1 [shape = 'u32[144,128]{1,0:T(1,128)}', space=vmem, size = 0x12000, scoped, tag = 'internal scratch']
  %s0 = inlined_call_operand.hbm [shape: f32[16,128], index: 0, kind: input, shape index: {}]
  %s1 = inlined_call_operand.hbm [shape: f32[128,128], index: 1, kind: input, shape index: {}]
  %s2 = inlined_call_operand.vmem [shape: f32[1,128], index: 2, kind: input, shape index: {}]
  %s3 = inlined_call_operand.hbm [shape: f32[16,128], index: 3, kind: output, shape index: {}]
  %s4 = sld [smem:[#allocation0]]
  $region53: #{tpu_custom_call.1} parent=0
    _
  %s6 = ssub.s32 1, %s4
  %s7 = scalar_select 0, %s6, %s4
  $region1: #{tpu_custom_call.1} parent=0
    #allocation2 [shape = 'u8[8192]{0}', space=vmem, size = 0x2000, scoped, tag = 'input window, operand 0']
    #allocation3 [shape = 's32[2]{0}', space=sflag, size = 0x8, scoped, tag = 'scoped memory for tpu_custom_call.1']
    #allocation4 [shape = 's32[2]{0}', space=sflag, size = 0x8, scoped, tag = 'scoped memory for tpu_custom_call.1']
    #allocation5 [shape = 'u8[65536]{0}', space=vmem, size = 0x10000, scoped, tag = 'input window, operand 1, single buffered']
    #allocation6 [shape = 's32[1]{0}', space=sflag, size = 0x4, scoped, tag = 'scoped memory for tpu_custom_call.1']
    #allocation7 [shape = 'u8[8192]{0}', space=vmem, size = 0x2000, scoped, tag = 'output window, operand 0']
    %8 = vsyncpa [#allocation3], 0
    %s9 = scalar_lea.sflag [#allocation3], 1
    %10 = vsyncpa %s9, 0
    %11 = vsyncpa [#allocation6], 0
    %12 = vsyncpa [#allocation4], 0
    %s13 = scalar_lea.sflag [#allocation4], 1
    %14 = vsyncpa %s13, 0
    loop: start=0, step=1, limit=4
    $region2: #{tpu_custom_call.1} parent=1 // loop_pre_header
      _
    $region3: #{tpu_custom_call.1} parent=1 // loop_header
      %s16 = sphi 0, %s20
      %p17 = scmp.ge.s32.totalorder %s16, 4
      %s26 = sphi 0, %s28
      %s29 = sphi 0, %s26
      %s30 = sphi 0, %s29
      %s46 = sphi 0, %s30
      %s50 = sphi 0, %s50
      %s52 = sphi 0, %s50
      %s53 = sphi 0, %s52
      %s67 = sphi 0, %s53
      %s71 = sphi 0, %s71
      %s73 = sphi 0, %s71
      %s74 = sphi 0, %s73
      %s88 = sphi 0, %s74
      %s94 = sphi 0, %s96
      %s97 = sphi 0, %s94
      %s98 = sphi 0, %s97
      %s114 = sphi 0, %s98
    $region4: #{tpu_custom_call.1} parent=1 // loop_header_branch
      %19 = sbr.rel (%p17) target = $region8
    $region5: #{tpu_custom_call.1} parent=1 // loop_body
      %s21 = ssub.s32 %s16, 1
      %s22 = ssub.s32 %s16, 2
      %s23 = sadd.s32 %s16, 1
      %s24 = ssub.s32 %s16, %s23
      %p25 = scmp.eq.s32.totalorder %s24, 0
      %s27 = sadd.s32 %s26, 1
      %s28 = scalar_select %p25, %s26, %s27
      %p31 = pneg %p25
      %p32 = scmp.eq.s32.totalorder %s16, 1
      %p33 = por %p31, %p32
      %p34 = scmp.ne.s32.totalorder %s26, %s29
      %p35 = scmp.eq.s32.totalorder %s16, 0
      %p36 = por %p34, %p35
      %p37 = scmp.ne.s32.totalorder %s26, %s29
      %p38 = scmp.eq.s32.totalorder %s21, 1
      %p39 = por %p37, %p38
      %p40 = scmp.ne.s32.totalorder %s29, %s30
      %p41 = scmp.eq.s32.totalorder %s21, 0
      %p42 = por %p40, %p41
      %p43 = scmp.ne.s32.totalorder %s29, %s30
      %p44 = scmp.eq.s32.totalorder %s22, 1
      %p45 = por %p43, %p44
      %p47 = scmp.ne.s32.totalorder %s30, %s46
      %p48 = scmp.eq.s32.totalorder %s22, 0
      %p49 = por %p47, %p48
      %s51 = sadd.s32 %s50, 1
      %p54 = scmp.eq.s32.totalorder %s16, 1
      %p55 = scmp.ne.s32.totalorder %s50, %s52
      %p56 = scmp.eq.s32.totalorder %s16, 0
      %p57 = por %p55, %p56
      %p58 = scmp.ne.s32.totalorder %s50, %s52
      %p59 = scmp.eq.s32.totalorder %s21, 1
      %p60 = por %p58, %p59
      %p61 = scmp.ne.s32.totalorder %s52, %s53
      %p62 = scmp.eq.s32.totalorder %s21, 0
      %p63 = por %p61, %p62
      %p64 = scmp.ne.s32.totalorder %s52, %s53
      %p65 = scmp.eq.s32.totalorder %s22, 1
      %p66 = por %p64, %p65
      %p68 = scmp.ne.s32.totalorder %s53, %s67
      %p69 = scmp.eq.s32.totalorder %s22, 0
      %p70 = por %p68, %p69
      %s72 = sadd.s32 %s71, 1
      %p75 = scmp.eq.s32.totalorder %s16, 1
      %p76 = scmp.ne.s32.totalorder %s71, %s73
      %p77 = scmp.eq.s32.totalorder %s16, 0
      %p78 = por %p76, %p77
      %p79 = scmp.ne.s32.totalorder %s71, %s73
      %p80 = scmp.eq.s32.totalorder %s21, 1
      %p81 = por %p79, %p80
      %p82 = scmp.ne.s32.totalorder %s73, %s74
      %p83 = scmp.eq.s32.totalorder %s21, 0
      %p84 = por %p82, %p83
      %p85 = scmp.ne.s32.totalorder %s73, %s74
      %p86 = scmp.eq.s32.totalorder %s22, 1
      %p87 = por %p85, %p86
      %p89 = scmp.ne.s32.totalorder %s74, %s88
      %p90 = scmp.eq.s32.totalorder %s22, 0
      %p91 = por %p89, %p90
      %s92 = ssub.s32 %s16, %s23
      %p93 = scmp.eq.s32.totalorder %s92, 0
      %s95 = sadd.s32 %s94, 1
      %s96 = scalar_select %p93, %s94, %s95
      %p99 = pneg %p93
      %p100 = scmp.eq.s32.totalorder %s16, 1
      %p101 = por %p99, %p100
      %p102 = scmp.ne.s32.totalorder %s94, %s97
      %p103 = scmp.eq.s32.totalorder %s16, 0
      %p104 = por %p102, %p103
      %p105 = scmp.ne.s32.totalorder %s94, %s97
      %p106 = scmp.eq.s32.totalorder %s21, 1
      %p107 = por %p105, %p106
      %p108 = scmp.ne.s32.totalorder %s97, %s98
      %p109 = scmp.eq.s32.totalorder %s21, 0
      %p110 = por %p108, %p109
      %p111 = scmp.ne.s32.totalorder %s97, %s98
      %p112 = scmp.eq.s32.totalorder %s22, 1
      %p113 = por %p111, %p112
      %p115 = scmp.ne.s32.totalorder %s98, %s114
      %p116 = scmp.eq.s32.totalorder %s22, 0
      %p117 = por %p115, %p116
      %p118 = scmp.le.s32.totalorder 1, %s16
      %p119 = scmp.lt.s32.totalorder %s16, 3
      %p120 = pnand %p118, %p119
      %p121 = pneg %p120
      // Predicated region
      $region9: #{tpu_custom_call.1} parent=5 // pred_check
        _
      $region10: #{tpu_custom_call.1} parent=5 // pred_check_branch
        %123 = sbr.rel (%p120) target = $region12
      $region11: #{tpu_custom_call.1} parent=5 // pred_region
        %s124 = ssub.s32 %s16, 1
        // Predicated region
        $region13: #{tpu_custom_call.1} parent=11 // pred_check
          %p125 = pneg %p63
        $region14: #{tpu_custom_call.1} parent=11 // pred_check_branch
          %127 = sbr.rel (%p125) target = $region16
        $region15: #{tpu_custom_call.1} parent=11 // pred_region
          %s129 = ssub.s32 2048, 2048
          %130 = vsyncadd [#allocation6], %s129
          %s131 = sshll.u32 [#allocation5], 4
          %s132 = int_to_ptr.vmem [resolvable:$true] %s131
          %137 = dma.hbm_to_vmem [thread:$0]  %s1, 2048, %s132, [#allocation6], 128, 128, 8
        $region16: #{tpu_custom_call.1} parent=11 // pred_fallthru
          _
        // Predicated region
        $region17: #{tpu_custom_call.1} parent=11 // pred_check
          %p138 = pneg %p84
        $region18: #{tpu_custom_call.1} parent=11 // pred_check_branch
          %140 = sbr.rel (%p138) target = $region20
        $region19: #{tpu_custom_call.1} parent=11 // pred_region
          _
        $region20: #{tpu_custom_call.1} parent=11 // pred_fallthru
          _
      $region12: #{tpu_custom_call.1} parent=5 // pred_fallthru
        _
      %p141 = scmp.lt.s32.totalorder %s16, 2
      // Predicated region
      $region21: #{tpu_custom_call.1} parent=5 // pred_check
        %p142 = pneg %p141
      $region22: #{tpu_custom_call.1} parent=5 // pred_check_branch
        %144 = sbr.rel (%p142) target = $region24
      $region23: #{tpu_custom_call.1} parent=5 // pred_region
        // Predicated region
        $region25: #{tpu_custom_call.1} parent=23 // pred_check
          %p145 = pneg %p36
        $region26: #{tpu_custom_call.1} parent=23 // pred_check_branch
          %147 = sbr.rel (%p145) target = $region28
        $region27: #{tpu_custom_call.1} parent=23 // pred_region
          %s148 = sand.u32 %s26, 1
          %s149 = scalar_lea.sflag [#allocation3], %s148
          %s150 = sand.u32 %s26, 1
          %s151 = smul.addr %s150, 8
          %s152 = scalar_lea.vmem [#allocation2], %s151
          %s154 = ssub.s32 128, 128
          %155 = vsyncadd %s149, %s154
          %s156 = smul.addr %s16, 128
          %s157 = scalar_lea.hbm %s0, %s156
          %s159 = sshll.u32 %s152, 4
          %s160 = int_to_ptr.vmem [resolvable:$true] %s159
          %162 = dma.hbm_to_vmem [thread:$0]  %s157, 128, %s160, %s149
        $region28: #{tpu_custom_call.1} parent=23 // pred_fallthru
          _
      $region24: #{tpu_custom_call.1} parent=5 // pred_fallthru
        _
      %p163 = scmp.le.s32.totalorder 1, %s16
      %p164 = scmp.lt.s32.totalorder %s16, 3
      %p165 = pnand %p163, %p164
      %p166 = pneg %p165
      // Predicated region
      $region29: #{tpu_custom_call.1} parent=5 // pred_check
        _
      $region30: #{tpu_custom_call.1} parent=5 // pred_check_branch
        %168 = sbr.rel (%p165) target = $region32
      $region31: #{tpu_custom_call.1} parent=5 // pred_region
        %s169 = ssub.s32 %s16, 1
        %s170 = sand.u32 %s29, 1
        %s171 = scalar_lea.sflag [#allocation3], %s170
        %s172 = sand.u32 %s29, 1
        %s173 = smul.addr %s172, 8
        %s174 = scalar_lea.vmem [#allocation2], %s173
        // Predicated region
        $region33: #{tpu_custom_call.1} parent=31 // pred_check
          %p175 = pneg %p42
        $region34: #{tpu_custom_call.1} parent=31 // pred_check_branch
          %177 = sbr.rel (%p175) target = $region36
        $region35: #{tpu_custom_call.1} parent=31 // pred_region
          %178 = dma.done %s171, 128
        $region36: #{tpu_custom_call.1} parent=31 // pred_fallthru
          _
        // Predicated region
        $region37: #{tpu_custom_call.1} parent=31 // pred_check
          %p179 = pneg %p63
        $region38: #{tpu_custom_call.1} parent=31 // pred_check_branch
          %181 = sbr.rel (%p179) target = $region40
        $region39: #{tpu_custom_call.1} parent=31 // pred_region
          %182 = dma.done [#allocation6], 2048
        $region40: #{tpu_custom_call.1} parent=31 // pred_fallthru
          _
        %s183 = sand.u32 %s29, 1
        %s184 = scalar_lea.sflag [#allocation3], %s183
        %s185 = sand.u32 %s29, 1
        %s186 = smul.addr %s185, 8
        %s187 = scalar_lea.vmem [#allocation2], %s186
        %p188 = pneg %p42
        %p189 = pneg %p39
        %p190 = pneg %p63
        %p191 = pneg %p60
        %p192 = pneg %p84
        %p193 = pneg %p81
        %p194 = pneg %p110
        %p195 = pneg %p107
        %s196 = sand.u32 %s97, 1
        %s197 = scalar_lea.sflag [#allocation4], %s196
        %s198 = sand.u32 %s97, 1
        %s199 = smul.addr %s198, 8
        %s200 = scalar_lea.vmem [#allocation7], %s199
        %v201 = vld [vmem:[%s174] sm:$0xff]
        %v202 = vld [vmem:[#allocation5] sm:$0xff]
        %v203 = vld [vmem:[#allocation5 + $0x8] sm:$0xff]
        %v204 = vld [vmem:[#allocation5 + $0x10] sm:$0xff]
        %v205 = vld [vmem:[#allocation5 + $0x18] sm:$0xff]
        %v206 = vld [vmem:[#allocation5 + $0x20] sm:$0xff]
        %v207 = vld [vmem:[#allocation5 + $0x28] sm:$0xff]
        %v208 = vld [vmem:[#allocation5 + $0x30] sm:$0xff]
        %v209 = vld [vmem:[#allocation5 + $0x38] sm:$0xff]
        %v210 = vld [vmem:[#allocation5 + $0x40] sm:$0xff]
        %v211 = vld [vmem:[#allocation5 + $0x48] sm:$0xff]
        %v212 = vld [vmem:[#allocation5 + $0x50] sm:$0xff]
        %v213 = vld [vmem:[#allocation5 + $0x58] sm:$0xff]
        %v214 = vld [vmem:[#allocation5 + $0x60] sm:$0xff]
        %v215 = vld [vmem:[#allocation5 + $0x68] sm:$0xff]
        %v216 = vld [vmem:[#allocation5 + $0x70] sm:$0xff]
        %v217 = vld [vmem:[#allocation5 + $0x78] sm:$0xff]
        %v218 = vld [vmem:[%s2] sm:$0x1]
        %v220 = vlaneseq
        %v221 = vshrl.u32 %v220, 7
        %v222 = vsub.s32 0, %v221
        %v223 = vrot.slane %v218, %v222
        %225 = vmatprep.subr.mxu0 0.0
        %226 = vmatpush1.msra.mxu0 %v202
        %227 = vmatprep.subr.mxu0 0.0
        %228 = vmatpush1.msra.mxu0 %v203
        %229 = vmatprep.subr.mxu0 0.0
        %230 = vmatpush1.msra.mxu0 %v204
        %231 = vmatprep.subr.mxu0 0.0
        %232 = vmatpush1.msra.mxu0 %v205
        %233 = vmatprep.subr.mxu0 0.0
        %234 = vmatpush1.msra.mxu0 %v206
        %235 = vmatprep.subr.mxu0 0.0
        %236 = vmatpush1.msra.mxu0 %v207
        %237 = vmatprep.subr.mxu0 0.0
        %238 = vmatpush1.msra.mxu0 %v208
        %239 = vmatprep.subr.mxu0 0.0
        %240 = vmatpush1.msra.mxu0 %v209
        %241 = vmatprep.subr.mxu0 0.0
        %242 = vmatpush1.msra.mxu0 %v210
        %243 = vmatprep.subr.mxu0 0.0
        %244 = vmatpush1.msra.mxu0 %v211
        %245 = vmatprep.subr.mxu0 0.0
        %246 = vmatpush1.msra.mxu0 %v212
        %247 = vmatprep.subr.mxu0 0.0
        %248 = vmatpush1.msra.mxu0 %v213
        %249 = vmatprep.subr.mxu0 0.0
        %250 = vmatpush1.msra.mxu0 %v214
        %251 = vmatprep.subr.mxu0 0.0
        %252 = vmatpush1.msra.mxu0 %v215
        %253 = vmatprep.subr.mxu0 0.0
        %254 = vmatpush1.msra.mxu0 %v216
        %255 = vmatprep.subr.mxu0 0.0
        %256 = vmatpush1.msra.mxu0 %v217
        %257 = vmatprep.subr.mxu0 0.0
        %258 = vmatpush1.msra.mxu0 0.0
        %259 = vmatprep.subr.mxu0 0.0
        %260 = vmatpush1.msra.mxu0 0.0
        %261 = vmatprep.subr.mxu0 0.0
        %262 = vmatpush1.msra.mxu0 0.0
        %263 = vmatprep.subr.mxu0 0.0
        %264 = vmatpush1.msra.mxu0 0.0
        %265 = vmatprep.subr.mxu0 0.0
        %266 = vmatpush1.msra.mxu0 0.0
        %267 = vmatprep.subr.mxu0 0.0
        %268 = vmatpush1.msra.mxu0 0.0
        %269 = vmatprep.subr.mxu0 0.0
        %270 = vmatpush1.msra.mxu0 0.0
        %271 = vmatprep.subr.mxu0 0.0
        %272 = vmatpush1.msra.mxu0 0.0
        %273 = vmatprep.subr.mxu0 0.0
        %274 = vmatpush1.msra.mxu0 0.0
        %275 = vmatprep.subr.mxu0 0.0
        %276 = vmatpush1.msra.mxu0 0.0
        %277 = vmatprep.subr.mxu0 0.0
        %278 = vmatpush1.msra.mxu0 0.0
        %279 = vmatprep.subr.mxu0 0.0
        %280 = vmatpush1.msra.mxu0 0.0
        %281 = vmatprep.subr.mxu0 0.0
        %282 = vmatpush1.msra.mxu0 0.0
        %283 = vmatprep.subr.mxu0 0.0
        %284 = vmatpush1.msra.mxu0 0.0
        %285 = vmatprep.subr.mxu0 0.0
        %286 = vmatpush1.msra.mxu0 0.0
        %287 = vmatprep.subr.mxu0 0.0
        %288 = vmatpush1.msra.mxu0 0.0
        %289 = vmatprep.mubr.f32.mxu0 0.0
        %290 = vmatmul.mubr.f32.gmra.mrb[0].mxu0 %v201
        %v291 = vpop.f32.mrb[0].mxu0
        %v292 = vadd.f32 %v223, %v291
        %v293 = vpop.f32.mrb[0].mxu0
        %294 = vdwg.mxu0
        %295 = vst [vmem:[%s200] sm:$0xff] %v292
        %s296 = sand.u32 %s97, 1
        %s297 = scalar_lea.sflag [#allocation4], %s296
        %s298 = sand.u32 %s97, 1
        %s299 = smul.addr %s298, 8
        %s300 = scalar_lea.vmem [#allocation7], %s299
        // Predicated region
        $region41: #{tpu_custom_call.1} parent=31 // pred_check
          %p301 = pneg %p107
        $region42: #{tpu_custom_call.1} parent=31 // pred_check_branch
          %303 = sbr.rel (%p301) target = $region44
        $region43: #{tpu_custom_call.1} parent=31 // pred_region
          %s305 = ssub.s32 128, 128
          %306 = vsyncadd %s297, %s305
          %s307 = smul.addr %s21, 128
          %s308 = scalar_lea.hbm %s3, %s307
          %s310 = sshll.u32 %s300, 4
          %s311 = int_to_ptr.vmem [resolvable:$true] %s310
          %313 = dma.vmem_to_hbm [thread:$0]  %s311, 128, %s308, %s297
        $region44: #{tpu_custom_call.1} parent=31 // pred_fallthru
          _
      $region32: #{tpu_custom_call.1} parent=5 // pred_fallthru
        _
      %p314 = scmp.le.s32.totalorder 2, %s16
      // Predicated region
      $region45: #{tpu_custom_call.1} parent=5 // pred_check
        %p315 = pneg %p314
      $region46: #{tpu_custom_call.1} parent=5 // pred_check_branch
        %317 = sbr.rel (%p315) target = $region48
      $region47: #{tpu_custom_call.1} parent=5 // pred_region
        %s318 = ssub.s32 %s16, 2
        // Predicated region
        $region49: #{tpu_custom_call.1} parent=47 // pred_check
          %p319 = pneg %p113
        $region50: #{tpu_custom_call.1} parent=47 // pred_check_branch
          %321 = sbr.rel (%p319) target = $region52
        $region51: #{tpu_custom_call.1} parent=47 // pred_region
          %s322 = sand.u32 %s98, 1
          %s323 = scalar_lea.sflag [#allocation4], %s322
          %s324 = sand.u32 %s98, 1
          %s325 = smul.addr %s324, 8
          %s326 = scalar_lea.vmem [#allocation7], %s325
          %327 = dma.done %s323, 128
        $region52: #{tpu_custom_call.1} parent=47 // pred_fallthru
          _
      $region48: #{tpu_custom_call.1} parent=5 // pred_fallthru
        _
    $region6: #{tpu_custom_call.1} parent=1 // loop_footer
      %s20 = sadd.s32 1, %s16
    $region7: #{tpu_custom_call.1} parent=1 // loop_footer_branch
      %15 = sbr.rel target = $region3
    $region8: #{tpu_custom_call.1} parent=1 // loop_exit
      _
    %328 = vsyncpa [#allocation3], 1
    %s329 = scalar_lea.sflag [#allocation3], 1
    %330 = vsyncpa %s329, 1
    %331 = vsyncpa [#allocation6], 1
    %332 = vsyncpa [#allocation4], 1
    %s333 = scalar_lea.sflag [#allocation4], 1
    %334 = vsyncpa %s333, 1

</llo_original>
